<compile_context>
chip_gen: v7x
topology: tpu7x:2x2x1
jax: 0.10.0
libtpu: 0.0.40
codegen_flags: <defaults>
</compile_context>

<pallas_src>
import functools

import jax
import jax.numpy as jnp
from jax.experimental import pallas as pl
from jax.experimental.pallas import tpu as pltpu

_LANE = 128          # lane width of a vreg / minimum lane tile
_CHUNK = 512         # in-kernel sub-chunk (lanes) -> h1/h2 stay in vregs


def _round_up(n, m):
    return ((n + m - 1) // m) * m


def _choose_tiles(B, tb_req):
    """Pick (tb, chunk, n_steps) for a batch of B samples."""
    if B <= _LANE:
        return _LANE, _LANE, 1
    tb = max(_LANE, min(_round_up(tb_req, _LANE), _round_up(B, _LANE)))
    # v7x megacore: keep >= 2 grid steps when the batch allows it so the
    # "parallel" batch axis can be split across both TensorCores.
    if tb >= B:
        tb = max(_LANE, _round_up(pl.cdiv(B, 2), _LANE))
    n_steps = pl.cdiv(B, tb)
    chunk = _LANE
    for c in (_CHUNK, 256, _LANE):
        if tb % c == 0:
            chunk = c
            break
    return tb, chunk, n_steps


def _mlp_kernel(x_ref, w1_ref, b1_ref, w2_ref, b2_ref, w3_ref, b3_ref, o_ref,
                *, chunk):
    # Tiny parameters: load once per grid step, reused by every sub-chunk.
    w1 = w1_ref[...]          # (16, 2)
    b1 = b1_ref[...]          # (16, 1)
    w2 = w2_ref[...]          # (32, 16)
    b2 = b2_ref[...]          # (32, 1)
    w3 = w3_ref[...]          # (2, 32)
    b3 = b3_ref[...]          # (2, 1)

    n_chunks = x_ref.shape[1] // chunk   # exact by construction

    # Static Python loop == fully-unrolled fori_loop(unroll=True); offsets are
    # compile-time constants (multiples of 128), so slices are free views and
    # h1/h2 never leave the vreg file (8 + 16 vregs at chunk=512).
    for c in range(n_chunks):
        sl = pl.ds(c * chunk, chunk)
        xc = x_ref[:, sl]                                          # (2, C)

        # Layer 1 (K=2): two broadcast-FMAs on the VPU (an MXU pass with K=2
        # would be pure waste).
        h1 = w1[:, 0:1] * xc[0:1, :] + w1[:, 1:2] * xc[1:2, :]     # (16, C)
        h1 = jnp.maximum(h1 + b1, 0.0)

        # Layers 2 and 3 on the MXU (it has large slack in this kernel).
        h2 = jnp.dot(w2, h1, preferred_element_type=jnp.float32,
                     precision=jax.lax.Precision.HIGHEST)          # (32, C)
        h2 = jnp.maximum(h2 + b2, 0.0)

        y = jnp.dot(w3, h2, preferred_element_type=jnp.float32,
                    precision=jax.lax.Precision.HIGHEST)           # (2, C)
        o_ref[:, sl] = (y + b3).astype(o_ref.dtype)


def generator_forward_batch_last(xt, params, *, tb=16384):
    """Forward pass in batch-last layout: xt (2, B) -> (2, B).

    Preferred entry point: no transposes or layout ops anywhere — the HBM
    arrays already match the kernel's lane-dense layout.
    """
    w1, b1 = params["w1"], params["b1"]    # (16, 2), (16,)
    w2, b2 = params["w2"], params["b2"]    # (32, 16), (32,)
    w3, b3 = params["w3"], params["b3"]    # (2, 32), (2,)

    B = xt.shape[1]
    tb, chunk, n_steps = _choose_tiles(B, tb)

    # Only tiny batches (< one 128-lane tile) get padded; larger non-dividing
    # batches are handled by Pallas' ragged last block (masked writeback).
    Bp = B
    if B < _LANE:
        Bp = _LANE
        xt = jnp.pad(xt, ((0, 0), (0, Bp - B)))

    # Biases as (out_features, 1): broadcast over the lane (batch) dimension.
    b1c = b1.reshape(16, 1)
    b2c = b2.reshape(32, 1)
    b3c = b3.reshape(2, 1)

    const = lambda i: (0, 0)
    in_specs = [
        pl.BlockSpec((2, tb), lambda i: (0, i)),   # x: batch-tiled over lanes
        pl.BlockSpec((16, 2), const),              # parameters: resident
        pl.BlockSpec((16, 1), const),
        pl.BlockSpec((32, 16), const),
        pl.BlockSpec((32, 1), const),
        pl.BlockSpec((2, 32), const),
        pl.BlockSpec((2, 1), const),
    ]
    out_spec = pl.BlockSpec((2, tb), lambda i: (0, i))

    flops = 2 * Bp * (2 * 16 + 16 * 32 + 32 * 2)
    bytes_accessed = 2 * Bp * 4 * 2 + 4 * (w1.size + w2.size + w3.size
                                           + b1.size + b2.size + b3.size)

    out = pl.pallas_call(
        functools.partial(_mlp_kernel, chunk=chunk),
        out_shape=jax.ShapeDtypeStruct((2, Bp), jnp.float32),
        grid=(n_steps,),
        in_specs=in_specs,
        out_specs=out_spec,
        compiler_params=pltpu.CompilerParams(
            dimension_semantics=("parallel",),
            vmem_limit_bytes=32 * 1024 * 1024,
        ),
        cost_estimate=pl.CostEstimate(
            flops=flops, transcendentals=0, bytes_accessed=bytes_accessed),
    )(xt, w1, b1c, w2, b2c, w3, b3c)

    if Bp != B:
        out = out[:, :B]
    return out


def generator_forward(x, params, *, tb=16384):
    """Torch-interface forward: x (B, 2) -> (B, 2), same math as the module.

    The two transposes here exist only to match the (B, 2) torch interface; a
    full pipeline should call `generator_forward_batch_last` and keep
    activations batch-last end-to-end, which removes them entirely.
    """
    return generator_forward_batch_last(x.T, params, tb=tb).T


def init_params(key):
    """PyTorch nn.Linear default init: U(-1/sqrt(fan_in), 1/sqrt(fan_in)).

    Weights are stored in torch layout (out_features, in_features)."""
    ks = jax.random.split(key, 6)

    def lin(kw, kb, fan_in, fan_out):
        bound = 1.0 / (fan_in ** 0.5)
        w = jax.random.uniform(kw, (fan_out, fan_in), jnp.float32, -bound, bound)
        b = jax.random.uniform(kb, (fan_out,), jnp.float32, -bound, bound)
        return w, b

    w1, b1 = lin(ks[0], ks[1], 2, 16)
    w2, b2 = lin(ks[2], ks[3], 16, 32)
    w3, b3 = lin(ks[4], ks[5], 32, 2)
    return {"w1": w1, "b1": b1, "w2": w2, "b2": b2, "w3": w3, "b3": b3}


def _reference(x, p):
    """Plain-JAX forward with exact nn.Linear semantics (y = x @ W.T + b)."""
    h1 = jnp.maximum(x @ p["w1"].T + p["b1"], 0.0)
    h2 = jnp.maximum(h1 @ p["w2"].T + p["b2"], 0.0)
    return h2 @ p["w3"].T + p["b3"]


if __name__ == "__main__":
    key = jax.random.PRNGKey(0)
    k_params, k_x1, k_x2 = jax.random.split(key, 3)
    params = init_params(k_params)

    # Tiny batch (pads up to a single 128-lane tile).
    x_small = jax.random.normal(k_x1, (8, 2), jnp.float32)
    y_small = generator_forward(x_small, params)
    jax.block_until_ready(y_small)
    assert y_small.shape == (8, 2)
    assert jnp.allclose(y_small, _reference(x_small, params), atol=1e-5, rtol=1e-5)

    # Non-multiple-of-128 batch: exercises the ragged last block and the
    # >=2-step grid (both TensorCores on v7x), with no full-array pad.
    x_med = jax.random.normal(k_x2, (300, 2), jnp.float32)
    y_med = generator_forward(x_med, params)
    jax.block_until_ready(y_med)
    assert y_med.shape == (300, 2)
    assert jnp.allclose(y_med, _reference(x_med, params), atol=1e-5, rtol=1e-5)

    # Batch-last entry point: zero wrapper-side transposes.
    yt = generator_forward_batch_last(x_med.T, params)
    jax.block_until_ready(yt)
    assert yt.shape == (2, 300)
    assert jnp.allclose(yt.T, _reference(x_med, params), atol=1e-5, rtol=1e-5)

    print("KERNEL_OK")
</pallas_src>

<mosaic_0001>
module attributes {stable_mosaic.version = 11 : i64} {
  func.func @_mlp_kernel(%arg0: i32, %arg1: memref<2x128xf32, #tpu.memory_space<vmem>>, %arg2: memref<16x2xf32, #tpu.memory_space<vmem>>, %arg3: memref<16x1xf32, #tpu.memory_space<vmem>>, %arg4: memref<32x16xf32, #tpu.memory_space<vmem>>, %arg5: memref<32x1xf32, #tpu.memory_space<vmem>>, %arg6: memref<2x32xf32, #tpu.memory_space<vmem>>, %arg7: memref<2x1xf32, #tpu.memory_space<vmem>>, %arg8: memref<2x128xf32, #tpu.memory_space<vmem>>) attributes {dimension_semantics = [#tpu.dimension_semantics<parallel>], iteration_bounds = array<i64: 1>, scalar_prefetch = 0 : i64, scratch_operands = 0 : i64, tpu.core_type = #tpu.core_type<tc>, window_params = [{transform_indices = @transform_0, window_bounds = array<i64: 2, 128>}, {pipeline_mode = #tpu.pipeline_mode<synchronous>, transform_indices = @transform_1, window_bounds = array<i64: 16, 2>}, {pipeline_mode = #tpu.pipeline_mode<synchronous>, transform_indices = @transform_2, window_bounds = array<i64: 16, 1>}, {pipeline_mode = #tpu.pipeline_mode<synchronous>, transform_indices = @transform_3, window_bounds = array<i64: 32, 16>}, {pipeline_mode = #tpu.pipeline_mode<synchronous>, transform_indices = @transform_4, window_bounds = array<i64: 32, 1>}, {pipeline_mode = #tpu.pipeline_mode<synchronous>, transform_indices = @transform_5, window_bounds = array<i64: 2, 32>}, {pipeline_mode = #tpu.pipeline_mode<synchronous>, transform_indices = @transform_6, window_bounds = array<i64: 2, 1>}, {transform_indices = @transform_7, window_bounds = array<i64: 2, 128>}]} {
    %c0 = arith.constant 0 : index
    %c0_0 = arith.constant 0 : index
    %0 = vector.load %arg2[%c0, %c0_0] : memref<16x2xf32, #tpu.memory_space<vmem>>, vector<16x2xf32>
    %c0_1 = arith.constant 0 : index
    %c0_2 = arith.constant 0 : index
    %1 = vector.load %arg3[%c0_1, %c0_2] : memref<16x1xf32, #tpu.memory_space<vmem>>, vector<16x1xf32>
    %c0_3 = arith.constant 0 : index
    %c0_4 = arith.constant 0 : index
    %2 = vector.load %arg4[%c0_3, %c0_4] : memref<32x16xf32, #tpu.memory_space<vmem>>, vector<32x16xf32>
    %c0_5 = arith.constant 0 : index
    %c0_6 = arith.constant 0 : index
    %3 = vector.load %arg5[%c0_5, %c0_6] : memref<32x1xf32, #tpu.memory_space<vmem>>, vector<32x1xf32>
    %c0_7 = arith.constant 0 : index
    %c0_8 = arith.constant 0 : index
    %4 = vector.load %arg6[%c0_7, %c0_8] : memref<2x32xf32, #tpu.memory_space<vmem>>, vector<2x32xf32>
    %c0_9 = arith.constant 0 : index
    %c0_10 = arith.constant 0 : index
    %5 = vector.load %arg7[%c0_9, %c0_10] : memref<2x1xf32, #tpu.memory_space<vmem>>, vector<2x1xf32>
    %c0_11 = arith.constant 0 : index
    %c0_12 = arith.constant 0 : index
    %6 = vector.load %arg1[%c0_11, %c0_12] : memref<2x128xf32, #tpu.memory_space<vmem>>, vector<2x128xf32>
    %7 = vector.extract_strided_slice %0 {offsets = [0, 0], sizes = [16, 1], strides = [1, 1]} : vector<16x2xf32> to vector<16x1xf32>
    %8 = vector.extract_strided_slice %6 {offsets = [0, 0], sizes = [1, 128], strides = [1, 1]} : vector<2x128xf32> to vector<1x128xf32>
    %9 = vector.broadcast %7 : vector<16x1xf32> to vector<16x128xf32>
    %10 = vector.broadcast %8 : vector<1x128xf32> to vector<16x128xf32>
    %11 = arith.mulf %9, %10 : vector<16x128xf32>
    %12 = vector.extract_strided_slice %0 {offsets = [0, 1], sizes = [16, 1], strides = [1, 1]} : vector<16x2xf32> to vector<16x1xf32>
    %13 = vector.extract_strided_slice %6 {offsets = [1, 0], sizes = [1, 128], strides = [1, 1]} : vector<2x128xf32> to vector<1x128xf32>
    %14 = vector.broadcast %12 : vector<16x1xf32> to vector<16x128xf32>
    %15 = vector.broadcast %13 : vector<1x128xf32> to vector<16x128xf32>
    %16 = arith.mulf %14, %15 : vector<16x128xf32>
    %17 = arith.addf %11, %16 : vector<16x128xf32>
    %18 = vector.broadcast %1 : vector<16x1xf32> to vector<16x128xf32>
    %19 = arith.addf %17, %18 : vector<16x128xf32>
    %cst = arith.constant 0.000000e+00 : f32
    %20 = vector.broadcast %cst : f32 to vector<16x128xf32>
    %21 = arith.maximumf %19, %20 : vector<16x128xf32>
    %cst_13 = arith.constant dense<0.000000e+00> : vector<32x128xf32>
    %22 = tpu.matmul %2, %21, %cst_13 {dimension_numbers = #tpu.dot_dimension_numbers<[1], [0], [0], [1], [0, 0, 1, 1], [], []>, precision = #tpu.contract_precision<fp32>} : vector<32x16xf32>, vector<16x128xf32>, vector<32x128xf32> -> vector<32x128xf32>
    %23 = vector.broadcast %3 : vector<32x1xf32> to vector<32x128xf32>
    %24 = arith.addf %22, %23 : vector<32x128xf32>
    %cst_14 = arith.constant 0.000000e+00 : f32
    %25 = vector.broadcast %cst_14 : f32 to vector<32x128xf32>
    %26 = arith.maximumf %24, %25 : vector<32x128xf32>
    %cst_15 = arith.constant dense<0.000000e+00> : vector<2x128xf32>
    %27 = tpu.matmul %4, %26, %cst_15 {dimension_numbers = #tpu.dot_dimension_numbers<[1], [0], [0], [1], [0, 0, 1, 1], [], []>, precision = #tpu.contract_precision<fp32>} : vector<2x32xf32>, vector<32x128xf32>, vector<2x128xf32> -> vector<2x128xf32>
    %28 = vector.broadcast %5 : vector<2x1xf32> to vector<2x128xf32>
    %29 = arith.addf %27, %28 : vector<2x128xf32>
    %c0_16 = arith.constant 0 : index
    %c0_17 = arith.constant 0 : index
    %30 = vector.load %arg8[%c0_16, %c0_17] : memref<2x128xf32, #tpu.memory_space<vmem>>, vector<2x128xf32>
    tpu.vector_store %arg8[%c0_16, %c0_17], %29 {strides = array<i32>} : memref<2x128xf32, #tpu.memory_space<vmem>>, vector<2x128xf32>,
    return
  }
  func.func @transform_0(%arg0: i32) -> (i32, i32) {
    %c0_i32 = arith.constant 0 : i32
    %c0_i32_0 = arith.constant 0 : i32
    return %c0_i32, %arg0 : i32, i32
  }
  func.func @transform_1(%arg0: i32) -> (i32, i32) {
    %c0_i32 = arith.constant 0 : i32
    %c0_i32_0 = arith.constant 0 : i32
    %c0_i32_1 = arith.constant 0 : i32
    return %c0_i32, %c0_i32_0 : i32, i32
  }
  func.func @transform_2(%arg0: i32) -> (i32, i32) {
    %c0_i32 = arith.constant 0 : i32
    %c0_i32_0 = arith.constant 0 : i32
    %c0_i32_1 = arith.constant 0 : i32
    return %c0_i32, %c0_i32_0 : i32, i32
  }
  func.func @transform_3(%arg0: i32) -> (i32, i32) {
    %c0_i32 = arith.constant 0 : i32
    %c0_i32_0 = arith.constant 0 : i32
    %c0_i32_1 = arith.constant 0 : i32
    return %c0_i32, %c0_i32_0 : i32, i32
  }
  func.func @transform_4(%arg0: i32) -> (i32, i32) {
    %c0_i32 = arith.constant 0 : i32
    %c0_i32_0 = arith.constant 0 : i32
    %c0_i32_1 = arith.constant 0 : i32
    return %c0_i32, %c0_i32_0 : i32, i32
  }
  func.func @transform_5(%arg0: i32) -> (i32, i32) {
    %c0_i32 = arith.constant 0 : i32
    %c0_i32_0 = arith.constant 0 : i32
    %c0_i32_1 = arith.constant 0 : i32
    return %c0_i32, %c0_i32_0 : i32, i32
  }
  func.func @transform_6(%arg0: i32) -> (i32, i32) {
    %c0_i32 = arith.constant 0 : i32
    %c0_i32_0 = arith.constant 0 : i32
    %c0_i32_1 = arith.constant 0 : i32
    return %c0_i32, %c0_i32_0 : i32, i32
  }
  func.func @transform_7(%arg0: i32) -> (i32, i32) {
    %c0_i32 = arith.constant 0 : i32
    %c0_i32_0 = arith.constant 0 : i32
    return %c0_i32, %arg0 : i32, i32
  }
}

</mosaic_0001>

<llo_original>
// kernel: tpu_custom_call.1
$region0: #{tpu_custom_call.1}
  #allocation0 [shape = 'u32[]', space=smem, size = 0x4, offset = 0x4, fixed_abs, tag = 'smem constant byte address 0x4 - core index']
  #allocation1 [shape = 'u32[144,128]{1,0:T(1,128)}', space=vmem, size = 0x12000, scoped, tag = 'internal scratch']
  %s0 = inlined_call_operand.vmem [shape: f32[2,128], index: 0, kind: input, shape index: {}]
  %s1 = inlined_call_operand.vmem [shape: f32[16,2], index: 1, kind: input, shape index: {}]
  %s2 = inlined_call_operand.vmem [shape: f32[16,1], index: 2, kind: input, shape index: {}]
  %s3 = inlined_call_operand.vmem [shape: f32[32,16], index: 3, kind: input, shape index: {}]
  %s4 = inlined_call_operand.vmem [shape: f32[32,1], index: 4, kind: input, shape index: {}]
  %s5 = inlined_call_operand.vmem [shape: f32[2,32], index: 5, kind: input, shape index: {}]
  %s6 = inlined_call_operand.vmem [shape: f32[2,1], index: 6, kind: input, shape index: {}]
  %s7 = inlined_call_operand.hbm [shape: f32[2,128], index: 7, kind: output, shape index: {}]
  %s8 = sld [smem:[#allocation0]]
  $region38: #{tpu_custom_call.1} parent=0
    _
  %s10 = ssub.s32 1, %s8
  %s11 = scalar_select 0, %s10, %s8
  $region1: #{tpu_custom_call.1} parent=0
    #allocation2 [shape = 'u8[1024]{0}', space=vmem, size = 0x400, scoped, tag = 'output window, operand 0, single buffered']
    #allocation3 [shape = 's32[1]{0}', space=sflag, size = 0x4, scoped, tag = 'scoped memory for tpu_custom_call.1']
    %12 = vsyncpa [#allocation3], 0
    // Predicated region
    $region2: #{tpu_custom_call.1} parent=1 // pred_check
      _
    $region3: #{tpu_custom_call.1} parent=1 // pred_check_branch
      %14 = sbr.rel (0) target = $region5
    $region4: #{tpu_custom_call.1} parent=1 // pred_region
      _
    $region5: #{tpu_custom_call.1} parent=1 // pred_fallthru
      _
    // Predicated region
    $region6: #{tpu_custom_call.1} parent=1 // pred_check
      _
    $region7: #{tpu_custom_call.1} parent=1 // pred_check_branch
      %16 = sbr.rel (0) target = $region9
    $region8: #{tpu_custom_call.1} parent=1 // pred_region
      _
    $region9: #{tpu_custom_call.1} parent=1 // pred_fallthru
      _
    // Predicated region
    $region10: #{tpu_custom_call.1} parent=1 // pred_check
      _
    $region11: #{tpu_custom_call.1} parent=1 // pred_check_branch
      %18 = sbr.rel (0) target = $region13
    $region12: #{tpu_custom_call.1} parent=1 // pred_region
      _
    $region13: #{tpu_custom_call.1} parent=1 // pred_fallthru
      _
    // Predicated region
    $region14: #{tpu_custom_call.1} parent=1 // pred_check
      _
    $region15: #{tpu_custom_call.1} parent=1 // pred_check_branch
      %20 = sbr.rel (0) target = $region17
    $region16: #{tpu_custom_call.1} parent=1 // pred_region
      _
    $region17: #{tpu_custom_call.1} parent=1 // pred_fallthru
      _
    // Predicated region
    $region18: #{tpu_custom_call.1} parent=1 // pred_check
      _
    $region19: #{tpu_custom_call.1} parent=1 // pred_check_branch
      %22 = sbr.rel (0) target = $region21
    $region20: #{tpu_custom_call.1} parent=1 // pred_region
      _
    $region21: #{tpu_custom_call.1} parent=1 // pred_fallthru
      _
    // Predicated region
    $region22: #{tpu_custom_call.1} parent=1 // pred_check
      _
    $region23: #{tpu_custom_call.1} parent=1 // pred_check_branch
      %24 = sbr.rel (0) target = $region25
    $region24: #{tpu_custom_call.1} parent=1 // pred_region
      _
    $region25: #{tpu_custom_call.1} parent=1 // pred_fallthru
      _
    // Predicated region
    $region26: #{tpu_custom_call.1} parent=1 // pred_check
      _
    $region27: #{tpu_custom_call.1} parent=1 // pred_check_branch
      %26 = sbr.rel (0) target = $region29
    $region28: #{tpu_custom_call.1} parent=1 // pred_region
      _
    $region29: #{tpu_custom_call.1} parent=1 // pred_fallthru
      _
    %v27 = vld [vmem:[%s1] sm:$0xff]
    %v28 = vld [vmem:[%s1 + $0x8] sm:$0xff]
    %v29 = vld [vmem:[%s2] sm:$0xff]
    %v30 = vld [vmem:[%s2 + $0x8] sm:$0xff]
    %v31 = vld [vmem:[%s3] sm:$0xff]
    %v32 = vld [vmem:[%s3 + $0x8] sm:$0xff]
    %v33 = vld [vmem:[%s3 + $0x10] sm:$0xff]
    %v34 = vld [vmem:[%s3 + $0x18] sm:$0xff]
    %v35 = vld [vmem:[%s4] sm:$0xff]
    %v36 = vld [vmem:[%s4 + $0x8] sm:$0xff]
    %v37 = vld [vmem:[%s4 + $0x10] sm:$0xff]
    %v38 = vld [vmem:[%s4 + $0x18] sm:$0xff]
    %v39 = vld [vmem:[%s5] sm:$0x3]
    %v40 = vld [vmem:[%s6] sm:$0x3]
    %v41 = vld [vmem:[%s0] sm:$0x3]
    %43 = vset.pattern.permute.xlu0 0
    %44 = vperm.xlu0 %43, %v27
    %v45 = vpop.permute.xlu0 %44
    %48 = vset.pattern.permute.xlu0 0
    %49 = vperm.xlu0 %48, %v28
    %v50 = vpop.permute.xlu0 %49
    %v52 = vlaneseq
    %v53 = vshrl.u32 %v52, 7
    %v54 = vsub.s32 0, %v53
    %v55 = vrot.slane %v41, %v54
    %v56 = vmul.f32 %v45, %v55
    %v57 = vmul.f32 %v50, %v55
    %58 = vset.pattern.permute.xlu0 1
    %59 = vperm.xlu0 %58, %v27
    %v60 = vpop.permute.xlu0 %59
    %62 = vset.pattern.permute.xlu0 1
    %63 = vperm.xlu0 %62, %v28
    %v64 = vpop.permute.xlu0 %63
    %v66 = vlaneseq
    %v67 = vshrl.u32 %v66, 7
    %v68 = vsub.s32 1, %v67
    %v69 = vrot.slane %v41, %v68
    %v70 = vmul.f32 %v60, %v69
    %v71 = vmul.f32 %v64, %v69
    %v72 = vadd.f32 %v56, %v70
    %v73 = vadd.f32 %v57, %v71
    %75 = vset.pattern.permute.xlu0 0
    %76 = vperm.xlu0 %75, %v29
    %v77 = vpop.permute.xlu0 %76
    %80 = vset.pattern.permute.xlu0 0
    %81 = vperm.xlu0 %80, %v30
    %v82 = vpop.permute.xlu0 %81
    %v84 = vadd.f32 %v72, %v77
    %v85 = vadd.f32 %v73, %v82
    %v86 = vmax.f32 %v84, 0.0
    %v87 = vmax.f32 %v85, 0.0
    %89 = vset.pattern.permute.xlu0 0
    %90 = vperm.xlu0 %89, %v35
    %v91 = vpop.permute.xlu0 %90
    %94 = vset.pattern.permute.xlu0 0
    %95 = vperm.xlu0 %94, %v36
    %v96 = vpop.permute.xlu0 %95
    %99 = vset.pattern.permute.xlu0 0
    %100 = vperm.xlu0 %99, %v37
    %v101 = vpop.permute.xlu0 %100
    %104 = vset.pattern.permute.xlu0 0
    %105 = vperm.xlu0 %104, %v38
    %v106 = vpop.permute.xlu0 %105
    %vm108 = vcmask 130048
    %v110 = vsel %vm108, %v31, 0
    %v113 = vsel %vm108, %v32, 0
    %v116 = vsel %vm108, %v33, 0
    %v119 = vsel %vm108, %v34, 0
    %121 = vmatprep.subr.mxu0 0.0
    %v122 = vand.u32 %v86, 4294901760
    %123 = vmatpush1.msra.mxu0 %v122
    %124 = vmatprep.subr.mxu0 0.0
    %v125 = vand.u32 %v87, 4294901760
    %126 = vmatpush1.msra.mxu0 %v125
    %127 = vmatprep.subr.mxu0 0.0
    %128 = vmatpush1.msra.mxu0 0.0
    %129 = vmatprep.subr.mxu0 0.0
    %130 = vmatpush1.msra.mxu0 0.0
    %131 = vmatprep.subr.mxu0 0.0
    %132 = vmatpush1.msra.mxu0 0.0
    %133 = vmatprep.subr.mxu0 0.0
    %134 = vmatpush1.msra.mxu0 0.0
    %135 = vmatprep.subr.mxu0 0.0
    %136 = vmatpush1.msra.mxu0 0.0
    %137 = vmatprep.subr.mxu0 0.0
    %138 = vmatpush1.msra.mxu0 0.0
    %139 = vmatprep.subr.mxu0 0.0
    %140 = vmatpush1.msra.mxu0 0.0
    %141 = vmatprep.subr.mxu0 0.0
    %142 = vmatpush1.msra.mxu0 0.0
    %143 = vmatprep.subr.mxu0 0.0
    %144 = vmatpush1.msra.mxu0 0.0
    %145 = vmatprep.subr.mxu0 0.0
    %146 = vmatpush1.msra.mxu0 0.0
    %147 = vmatprep.subr.mxu0 0.0
    %148 = vmatpush1.msra.mxu0 0.0
    %149 = vmatprep.subr.mxu0 0.0
    %150 = vmatpush1.msra.mxu0 0.0
    %151 = vmatprep.subr.mxu0 0.0
    %152 = vmatpush1.msra.mxu0 0.0
    %153 = vmatprep.subr.mxu0 0.0
    %154 = vmatpush1.msra.mxu0 0.0
    %155 = vmatprep.subr.mxu0 0.0
    %156 = vmatpush1.msra.mxu0 0.0
    %157 = vmatprep.subr.mxu0 0.0
    %158 = vmatpush1.msra.mxu0 0.0
    %159 = vmatprep.subr.mxu0 0.0
    %160 = vmatpush1.msra.mxu0 0.0
    %161 = vmatprep.subr.mxu0 0.0
    %162 = vmatpush1.msra.mxu0 0.0
    %163 = vmatprep.subr.mxu0 0.0
    %164 = vmatpush1.msra.mxu0 0.0
    %165 = vmatprep.subr.mxu0 0.0
    %166 = vmatpush1.msra.mxu0 0.0
    %167 = vmatprep.subr.mxu0 0.0
    %168 = vmatpush1.msra.mxu0 0.0
    %169 = vmatprep.subr.mxu0 0.0
    %170 = vmatpush1.msra.mxu0 0.0
    %171 = vmatprep.subr.mxu0 0.0
    %172 = vmatpush1.msra.mxu0 0.0
    %173 = vmatprep.subr.mxu0 0.0
    %174 = vmatpush1.msra.mxu0 0.0
    %175 = vmatprep.subr.mxu0 0.0
    %176 = vmatpush1.msra.mxu0 0.0
    %177 = vmatprep.subr.mxu0 0.0
    %178 = vmatpush1.msra.mxu0 0.0
    %179 = vmatprep.subr.mxu0 0.0
    %180 = vmatpush1.msra.mxu0 0.0
    %181 = vmatprep.subr.mxu0 0.0
    %182 = vmatpush1.msra.mxu0 0.0
    %183 = vmatprep.subr.mxu0 0.0
    %184 = vmatpush1.msra.mxu0 0.0
    %185 = vmatprep.subr.mxu0 0.0
    %186 = vmatpush1.msra.mxu0 0.0
    %187 = vmatprep.mubr.f32.mxu0 0.0
    %v188 = vand.u32 %v110, 4294901760
    %v189 = vsub.f32 %v110, %v188
    %v190 = vand.u32 %v189, 4294901760
    %v191 = vsub.f32 %v189, %v190
    %v192 = vand.u32 %v191, 4294901760
    %193 = vmatmul.mubr.f32.gmra.mrb[0].mxu0 %v192
    %v194 = vpop.f32.mrb[0].mxu0
    %v195 = vadd.f32 %v91, %v194
    %v196 = vpop.f32.mrb[0].mxu0
    %197 = vmatprep.mubr.f32.mxu0 0.0
    %v198 = vand.u32 %v113, 4294901760
    %v199 = vsub.f32 %v113, %v198
    %v200 = vand.u32 %v199, 4294901760
    %v201 = vsub.f32 %v199, %v200
    %v202 = vand.u32 %v201, 4294901760
    %203 = vmatmul.mubr.f32.gmra.mrb[0].mxu0 %v202
    %v204 = vpop.f32.mrb[0].mxu0
    %v205 = vadd.f32 %v96, %v204
    %v206 = vpop.f32.mrb[0].mxu0
    %207 = vmatprep.mubr.f32.mxu0 0.0
    %v208 = vand.u32 %v116, 4294901760
    %v209 = vsub.f32 %v116, %v208
    %v210 = vand.u32 %v209, 4294901760
    %v211 = vsub.f32 %v209, %v210
    %v212 = vand.u32 %v211, 4294901760
    %213 = vmatmul.mubr.f32.gmra.mrb[0].mxu0 %v212
    %v214 = vpop.f32.mrb[0].mxu0
    %v215 = vadd.f32 %v101, %v214
    %v216 = vpop.f32.mrb[0].mxu0
    %217 = vmatprep.mubr.f32.mxu0 0.0
    %v218 = vand.u32 %v119, 4294901760
    %v219 = vsub.f32 %v119, %v218
    %v220 = vand.u32 %v219, 4294901760
    %v221 = vsub.f32 %v219, %v220
    %v222 = vand.u32 %v221, 4294901760
    %223 = vmatmul.mubr.f32.gmra.mrb[0].mxu0 %v222
    %v224 = vpop.f32.mrb[0].mxu0
    %v225 = vadd.f32 %v106, %v224
    %v226 = vpop.f32.mrb[0].mxu0
    %227 = vdwg.mxu0
    %228 = vmatprep.subr.mxu0 0.0
    %v229 = vand.u32 %v86, 4294901760
    %v230 = vsub.f32 %v86, %v229
    %v231 = vand.u32 %v230, 4294901760
    %v232 = vsub.f32 %v230, %v231
    %v233 = vand.u32 %v232, 4294901760
    %234 = vmatpush1.msra.mxu0 %v233
    %235 = vmatprep.subr.mxu0 0.0
    %v236 = vand.u32 %v87, 4294901760
    %v237 = vsub.f32 %v87, %v236
    %v238 = vand.u32 %v237, 4294901760
    %v239 = vsub.f32 %v237, %v238
    %v240 = vand.u32 %v239, 4294901760
    %241 = vmatpush1.msra.mxu0 %v240
    %242 = vmatprep.subr.mxu0 0.0
    %243 = vmatpush1.msra.mxu0 0.0
    %244 = vmatprep.subr.mxu0 0.0
    %245 = vmatpush1.msra.mxu0 0.0
    %246 = vmatprep.subr.mxu0 0.0
    %247 = vmatpush1.msra.mxu0 0.0
    %248 = vmatprep.subr.mxu0 0.0
    %249 = vmatpush1.msra.mxu0 0.0
    %250 = vmatprep.subr.mxu0 0.0
    %251 = vmatpush1.msra.mxu0 0.0
    %252 = vmatprep.subr.mxu0 0.0
    %253 = vmatpush1.msra.mxu0 0.0
    %254 = vmatprep.subr.mxu0 0.0
    %255 = vmatpush1.msra.mxu0 0.0
    %256 = vmatprep.subr.mxu0 0.0
    %257 = vmatpush1.msra.mxu0 0.0
    %258 = vmatprep.subr.mxu0 0.0
    %259 = vmatpush1.msra.mxu0 0.0
    %260 = vmatprep.subr.mxu0 0.0
    %261 = vmatpush1.msra.mxu0 0.0
    %262 = vmatprep.subr.mxu0 0.0
    %263 = vmatpush1.msra.mxu0 0.0
    %264 = vmatprep.subr.mxu0 0.0
    %265 = vmatpush1.msra.mxu0 0.0
    %266 = vmatprep.subr.mxu0 0.0
    %267 = vmatpush1.msra.mxu0 0.0
    %268 = vmatprep.subr.mxu0 0.0
    %269 = vmatpush1.msra.mxu0 0.0
    %270 = vmatprep.subr.mxu0 0.0
    %271 = vmatpush1.msra.mxu0 0.0
    %272 = vmatprep.subr.mxu0 0.0
    %273 = vmatpush1.msra.mxu0 0.0
    %274 = vmatprep.subr.mxu0 0.0
    %275 = vmatpush1.msra.mxu0 0.0
    %276 = vmatprep.subr.mxu0 0.0
    %277 = vmatpush1.msra.mxu0 0.0
    %278 = vmatprep.subr.mxu0 0.0
    %279 = vmatpush1.msra.mxu0 0.0
    %280 = vmatprep.subr.mxu0 0.0
    %281 = vmatpush1.msra.mxu0 0.0
    %282 = vmatprep.subr.mxu0 0.0
    %283 = vmatpush1.msra.mxu0 0.0
    %284 = vmatprep.subr.mxu0 0.0
    %285 = vmatpush1.msra.mxu0 0.0
    %286 = vmatprep.subr.mxu0 0.0
    %287 = vmatpush1.msra.mxu0 0.0
    %288 = vmatprep.subr.mxu0 0.0
    %289 = vmatpush1.msra.mxu0 0.0
    %290 = vmatprep.subr.mxu0 0.0
    %291 = vmatpush1.msra.mxu0 0.0
    %292 = vmatprep.subr.mxu0 0.0
    %293 = vmatpush1.msra.mxu0 0.0
    %294 = vmatprep.subr.mxu0 0.0
    %295 = vmatpush1.msra.mxu0 0.0
    %296 = vmatprep.subr.mxu0 0.0
    %297 = vmatpush1.msra.mxu0 0.0
    %298 = vmatprep.subr.mxu0 0.0
    %299 = vmatpush1.msra.mxu0 0.0
    %300 = vmatprep.subr.mxu0 0.0
    %301 = vmatpush1.msra.mxu0 0.0
    %302 = vmatprep.mubr.f32.mxu0 0.0
    %v303 = vand.u32 %v110, 4294901760
    %304 = vmatmul.mubr.f32.gmra.mrb[0].mxu0 %v303
    %v305 = vpop.f32.mrb[0].mxu0
    %v306 = vadd.f32 %v195, %v305
    %v307 = vpop.f32.mrb[0].mxu0
    %308 = vmatprep.mubr.f32.mxu0 0.0
    %v309 = vand.u32 %v113, 4294901760
    %310 = vmatmul.mubr.f32.gmra.mrb[0].mxu0 %v309
    %v311 = vpop.f32.mrb[0].mxu0
    %v312 = vadd.f32 %v205, %v311
    %v313 = vpop.f32.mrb[0].mxu0
    %314 = vmatprep.mubr.f32.mxu0 0.0
    %v315 = vand.u32 %v116, 4294901760
    %316 = vmatmul.mubr.f32.gmra.mrb[0].mxu0 %v315
    %v317 = vpop.f32.mrb[0].mxu0
    %v318 = vadd.f32 %v215, %v317
    %v319 = vpop.f32.mrb[0].mxu0
    %320 = vmatprep.mubr.f32.mxu0 0.0
    %v321 = vand.u32 %v119, 4294901760
    %322 = vmatmul.mubr.f32.gmra.mrb[0].mxu0 %v321
    %v323 = vpop.f32.mrb[0].mxu0
    %v324 = vadd.f32 %v225, %v323
    %v325 = vpop.f32.mrb[0].mxu0
    %326 = vdwg.mxu0
    %327 = vmatprep.subr.mxu0 0.0
    %v328 = vand.u32 %v86, 4294901760
    %v329 = vsub.f32 %v86, %v328
    %330 = vmatpush1.msra.mxu0 %v329
    %331 = vmatprep.subr.mxu0 0.0
    %v332 = vand.u32 %v87, 4294901760
    %v333 = vsub.f32 %v87, %v332
    %334 = vmatpush1.msra.mxu0 %v333
    %335 = vmatprep.subr.mxu0 0.0
    %336 = vmatpush1.msra.mxu0 0.0
    %337 = vmatprep.subr.mxu0 0.0
    %338 = vmatpush1.msra.mxu0 0.0
    %339 = vmatprep.subr.mxu0 0.0
    %340 = vmatpush1.msra.mxu0 0.0
    %341 = vmatprep.subr.mxu0 0.0
    %342 = vmatpush1.msra.mxu0 0.0
    %343 = vmatprep.subr.mxu0 0.0
    %344 = vmatpush1.msra.mxu0 0.0
    %345 = vmatprep.subr.mxu0 0.0
    %346 = vmatpush1.msra.mxu0 0.0
    %347 = vmatprep.subr.mxu0 0.0
    %348 = vmatpush1.msra.mxu0 0.0
    %349 = vmatprep.subr.mxu0 0.0
    %350 = vmatpush1.msra.mxu0 0.0
    %351 = vmatprep.subr.mxu0 0.0
    %352 = vmatpush1.msra.mxu0 0.0
    %353 = vmatprep.subr.mxu0 0.0
    %354 = vmatpush1.msra.mxu0 0.0
    %355 = vmatprep.subr.mxu0 0.0
    %356 = vmatpush1.msra.mxu0 0.0
    %357 = vmatprep.subr.mxu0 0.0
    %358 = vmatpush1.msra.mxu0 0.0
    %359 = vmatprep.subr.mxu0 0.0
    %360 = vmatpush1.msra.mxu0 0.0
    %361 = vmatprep.subr.mxu0 0.0
    %362 = vmatpush1.msra.mxu0 0.0
    %363 = vmatprep.subr.mxu0 0.0
    %364 = vmatpush1.msra.mxu0 0.0
    %365 = vmatprep.subr.mxu0 0.0
    %366 = vmatpush1.msra.mxu0 0.0
    %367 = vmatprep.subr.mxu0 0.0
    %368 = vmatpush1.msra.mxu0 0.0
    %369 = vmatprep.subr.mxu0 0.0
    %370 = vmatpush1.msra.mxu0 0.0
    %371 = vmatprep.subr.mxu0 0.0
    %372 = vmatpush1.msra.mxu0 0.0
    %373 = vmatprep.subr.mxu0 0.0
    %374 = vmatpush1.msra.mxu0 0.0
    %375 = vmatprep.subr.mxu0 0.0
    %376 = vmatpush1.msra.mxu0 0.0
    %377 = vmatprep.subr.mxu0 0.0
    %378 = vmatpush1.msra.mxu0 0.0
    %379 = vmatprep.subr.mxu0 0.0
    %380 = vmatpush1.msra.mxu0 0.0
    %381 = vmatprep.subr.mxu0 0.0
    %382 = vmatpush1.msra.mxu0 0.0
    %383 = vmatprep.subr.mxu0 0.0
    %384 = vmatpush1.msra.mxu0 0.0
    %385 = vmatprep.subr.mxu0 0.0
    %386 = vmatpush1.msra.mxu0 0.0
    %387 = vmatprep.subr.mxu0 0.0
    %388 = vmatpush1.msra.mxu0 0.0
    %389 = vmatprep.subr.mxu0 0.0
    %390 = vmatpush1.msra.mxu0 0.0
    %391 = vmatprep.subr.mxu0 0.0
    %392 = vmatpush1.msra.mxu0 0.0
    %393 = vmatprep.subr.mxu0 0.0
    %394 = vmatpush1.msra.mxu0 0.0
    %395 = vmatprep.mubr.f32.mxu0 0.0
    %v396 = vand.u32 %v110, 4294901760
    %v397 = vsub.f32 %v110, %v396
    %398 = vmatmul.mubr.f32.gmra.mrb[0].mxu0 %v397
    %v399 = vpop.f32.mrb[0].mxu0
    %v400 = vadd.f32 %v306, %v399
    %v401 = vpop.f32.mrb[0].mxu0
    %402 = vmatprep.mubr.f32.mxu0 0.0
    %v403 = vand.u32 %v113, 4294901760
    %v404 = vsub.f32 %v113, %v403
    %405 = vmatmul.mubr.f32.gmra.mrb[0].mxu0 %v404
    %v406 = vpop.f32.mrb[0].mxu0
    %v407 = vadd.f32 %v312, %v406
    %v408 = vpop.f32.mrb[0].mxu0
    %409 = vmatprep.mubr.f32.mxu0 0.0
    %v410 = vand.u32 %v116, 4294901760
    %v411 = vsub.f32 %v116, %v410
    %412 = vmatmul.mubr.f32.gmra.mrb[0].mxu0 %v411
    %v413 = vpop.f32.mrb[0].mxu0
    %v414 = vadd.f32 %v318, %v413
    %v415 = vpop.f32.mrb[0].mxu0
    %416 = vmatprep.mubr.f32.mxu0 0.0
    %v417 = vand.u32 %v119, 4294901760
    %v418 = vsub.f32 %v119, %v417
    %419 = vmatmul.mubr.f32.gmra.mrb[0].mxu0 %v418
    %v420 = vpop.f32.mrb[0].mxu0
    %v421 = vadd.f32 %v324, %v420
    %v422 = vpop.f32.mrb[0].mxu0
    %423 = vdwg.mxu0
    %424 = vmatprep.subr.mxu0 0.0
    %v425 = vand.u32 %v86, 4294901760
    %426 = vmatpush1.msra.mxu0 %v425
    %427 = vmatprep.subr.mxu0 0.0
    %v428 = vand.u32 %v87, 4294901760
    %429 = vmatpush1.msra.mxu0 %v428
    %430 = vmatprep.subr.mxu0 0.0
    %431 = vmatpush1.msra.mxu0 0.0
    %432 = vmatprep.subr.mxu0 0.0
    %433 = vmatpush1.msra.mxu0 0.0
    %434 = vmatprep.subr.mxu0 0.0
    %435 = vmatpush1.msra.mxu0 0.0
    %436 = vmatprep.subr.mxu0 0.0
    %437 = vmatpush1.msra.mxu0 0.0
    %438 = vmatprep.subr.mxu0 0.0
    %439 = vmatpush1.msra.mxu0 0.0
    %440 = vmatprep.subr.mxu0 0.0
    %441 = vmatpush1.msra.mxu0 0.0
    %442 = vmatprep.subr.mxu0 0.0
    %443 = vmatpush1.msra.mxu0 0.0
    %444 = vmatprep.subr.mxu0 0.0
    %445 = vmatpush1.msra.mxu0 0.0
    %446 = vmatprep.subr.mxu0 0.0
    %447 = vmatpush1.msra.mxu0 0.0
    %448 = vmatprep.subr.mxu0 0.0
    %449 = vmatpush1.msra.mxu0 0.0
    %450 = vmatprep.subr.mxu0 0.0
    %451 = vmatpush1.msra.mxu0 0.0
    %452 = vmatprep.subr.mxu0 0.0
    %453 = vmatpush1.msra.mxu0 0.0
    %454 = vmatprep.subr.mxu0 0.0
    %455 = vmatpush1.msra.mxu0 0.0
    %456 = vmatprep.subr.mxu0 0.0
    %457 = vmatpush1.msra.mxu0 0.0
    %458 = vmatprep.subr.mxu0 0.0
    %459 = vmatpush1.msra.mxu0 0.0
    %460 = vmatprep.subr.mxu0 0.0
    %461 = vmatpush1.msra.mxu0 0.0
    %462 = vmatprep.subr.mxu0 0.0
    %463 = vmatpush1.msra.mxu0 0.0
    %464 = vmatprep.subr.mxu0 0.0
    %465 = vmatpush1.msra.mxu0 0.0
    %466 = vmatprep.subr.mxu0 0.0
    %467 = vmatpush1.msra.mxu0 0.0
    %468 = vmatprep.subr.mxu0 0.0
    %469 = vmatpush1.msra.mxu0 0.0
    %470 = vmatprep.subr.mxu0 0.0
    %471 = vmatpush1.msra.mxu0 0.0
    %472 = vmatprep.subr.mxu0 0.0
    %473 = vmatpush1.msra.mxu0 0.0
    %474 = vmatprep.subr.mxu0 0.0
    %475 = vmatpush1.msra.mxu0 0.0
    %476 = vmatprep.subr.mxu0 0.0
    %477 = vmatpush1.msra.mxu0 0.0
    %478 = vmatprep.subr.mxu0 0.0
    %479 = vmatpush1.msra.mxu0 0.0
    %480 = vmatprep.subr.mxu0 0.0
    %481 = vmatpush1.msra.mxu0 0.0
    %482 = vmatprep.subr.mxu0 0.0
    %483 = vmatpush1.msra.mxu0 0.0
    %484 = vmatprep.subr.mxu0 0.0
    %485 = vmatpush1.msra.mxu0 0.0
    %486 = vmatprep.subr.mxu0 0.0
    %487 = vmatpush1.msra.mxu0 0.0
    %488 = vmatprep.subr.mxu0 0.0
    %489 = vmatpush1.msra.mxu0 0.0
    %490 = vmatprep.mubr.f32.mxu0 0.0
    %v491 = vand.u32 %v110, 4294901760
    %v492 = vsub.f32 %v110, %v491
    %v493 = vand.u32 %v492, 4294901760
    %494 = vmatmul.mubr.f32.gmra.mrb[0].mxu0 %v493
    %v495 = vpop.f32.mrb[0].mxu0
    %v496 = vadd.f32 %v400, %v495
    %v497 = vpop.f32.mrb[0].mxu0
    %498 = vmatprep.mubr.f32.mxu0 0.0
    %v499 = vand.u32 %v113, 4294901760
    %v500 = vsub.f32 %v113, %v499
    %v501 = vand.u32 %v500, 4294901760
    %502 = vmatmul.mubr.f32.gmra.mrb[0].mxu0 %v501
    %v503 = vpop.f32.mrb[0].mxu0
    %v504 = vadd.f32 %v407, %v503
    %v505 = vpop.f32.mrb[0].mxu0
    %506 = vmatprep.mubr.f32.mxu0 0.0
    %v507 = vand.u32 %v116, 4294901760
    %v508 = vsub.f32 %v116, %v507
    %v509 = vand.u32 %v508, 4294901760
    %510 = vmatmul.mubr.f32.gmra.mrb[0].mxu0 %v509
    %v511 = vpop.f32.mrb[0].mxu0
    %v512 = vadd.f32 %v414, %v511
    %v513 = vpop.f32.mrb[0].mxu0
    %514 = vmatprep.mubr.f32.mxu0 0.0
    %v515 = vand.u32 %v119, 4294901760
    %v516 = vsub.f32 %v119, %v515
    %v517 = vand.u32 %v516, 4294901760
    %518 = vmatmul.mubr.f32.gmra.mrb[0].mxu0 %v517
    %v519 = vpop.f32.mrb[0].mxu0
    %v520 = vadd.f32 %v421, %v519
    %v521 = vpop.f32.mrb[0].mxu0
    %522 = vdwg.mxu0
    %523 = vmatprep.subr.mxu0 0.0
    %v524 = vand.u32 %v86, 4294901760
    %v525 = vsub.f32 %v86, %v524
    %v526 = vand.u32 %v525, 4294901760
    %527 = vmatpush1.msra.mxu0 %v526
    %528 = vmatprep.subr.mxu0 0.0
    %v529 = vand.u32 %v87, 4294901760
    %v530 = vsub.f32 %v87, %v529
    %v531 = vand.u32 %v530, 4294901760
    %532 = vmatpush1.msra.mxu0 %v531
    %533 = vmatprep.subr.mxu0 0.0
    %534 = vmatpush1.msra.mxu0 0.0
    %535 = vmatprep.subr.mxu0 0.0
    %536 = vmatpush1.msra.mxu0 0.0
    %537 = vmatprep.subr.mxu0 0.0
    %538 = vmatpush1.msra.mxu0 0.0
    %539 = vmatprep.subr.mxu0 0.0
    %540 = vmatpush1.msra.mxu0 0.0
    %541 = vmatprep.subr.mxu0 0.0
    %542 = vmatpush1.msra.mxu0 0.0
    %543 = vmatprep.subr.mxu0 0.0
    %544 = vmatpush1.msra.mxu0 0.0
    %545 = vmatprep.subr.mxu0 0.0
    %546 = vmatpush1.msra.mxu0 0.0
    %547 = vmatprep.subr.mxu0 0.0
    %548 = vmatpush1.msra.mxu0 0.0
    %549 = vmatprep.subr.mxu0 0.0
    %550 = vmatpush1.msra.mxu0 0.0
    %551 = vmatprep.subr.mxu0 0.0
    %552 = vmatpush1.msra.mxu0 0.0
    %553 = vmatprep.subr.mxu0 0.0
    %554 = vmatpush1.msra.mxu0 0.0
    %555 = vmatprep.subr.mxu0 0.0
    %556 = vmatpush1.msra.mxu0 0.0
    %557 = vmatprep.subr.mxu0 0.0
    %558 = vmatpush1.msra.mxu0 0.0
    %559 = vmatprep.subr.mxu0 0.0
    %560 = vmatpush1.msra.mxu0 0.0
    %561 = vmatprep.subr.mxu0 0.0
    %562 = vmatpush1.msra.mxu0 0.0
    %563 = vmatprep.subr.mxu0 0.0
    %564 = vmatpush1.msra.mxu0 0.0
    %565 = vmatprep.subr.mxu0 0.0
    %566 = vmatpush1.msra.mxu0 0.0
    %567 = vmatprep.subr.mxu0 0.0
    %568 = vmatpush1.msra.mxu0 0.0
    %569 = vmatprep.subr.mxu0 0.0
    %570 = vmatpush1.msra.mxu0 0.0
    %571 = vmatprep.subr.mxu0 0.0
    %572 = vmatpush1.msra.mxu0 0.0
    %573 = vmatprep.subr.mxu0 0.0
    %574 = vmatpush1.msra.mxu0 0.0
    %575 = vmatprep.subr.mxu0 0.0
    %576 = vmatpush1.msra.mxu0 0.0
    %577 = vmatprep.subr.mxu0 0.0
    %578 = vmatpush1.msra.mxu0 0.0
    %579 = vmatprep.subr.mxu0 0.0
    %580 = vmatpush1.msra.mxu0 0.0
    %581 = vmatprep.subr.mxu0 0.0
    %582 = vmatpush1.msra.mxu0 0.0
    %583 = vmatprep.subr.mxu0 0.0
    %584 = vmatpush1.msra.mxu0 0.0
    %585 = vmatprep.subr.mxu0 0.0
    %586 = vmatpush1.msra.mxu0 0.0
    %587 = vmatprep.subr.mxu0 0.0
    %588 = vmatpush1.msra.mxu0 0.0
    %589 = vmatprep.subr.mxu0 0.0
    %590 = vmatpush1.msra.mxu0 0.0
    %591 = vmatprep.subr.mxu0 0.0
    %592 = vmatpush1.msra.mxu0 0.0
    %593 = vmatprep.mubr.f32.mxu0 0.0
    %v594 = vand.u32 %v110, 4294901760
    %595 = vmatmul.mubr.f32.gmra.mrb[0].mxu0 %v594
    %v596 = vpop.f32.mrb[0].mxu0
    %v597 = vadd.f32 %v496, %v596
    %v598 = vpop.f32.mrb[0].mxu0
    %599 = vmatprep.mubr.f32.mxu0 0.0
    %v600 = vand.u32 %v113, 4294901760
    %601 = vmatmul.mubr.f32.gmra.mrb[0].mxu0 %v600
    %v602 = vpop.f32.mrb[0].mxu0
    %v603 = vadd.f32 %v504, %v602
    %v604 = vpop.f32.mrb[0].mxu0
    %605 = vmatprep.mubr.f32.mxu0 0.0
    %v606 = vand.u32 %v116, 4294901760
    %607 = vmatmul.mubr.f32.gmra.mrb[0].mxu0 %v606
    %v608 = vpop.f32.mrb[0].mxu0
    %v609 = vadd.f32 %v512, %v608
    %v610 = vpop.f32.mrb[0].mxu0
    %611 = vmatprep.mubr.f32.mxu0 0.0
    %v612 = vand.u32 %v119, 4294901760
    %613 = vmatmul.mubr.f32.gmra.mrb[0].mxu0 %v612
    %v614 = vpop.f32.mrb[0].mxu0
    %v615 = vadd.f32 %v520, %v614
    %v616 = vpop.f32.mrb[0].mxu0
    %617 = vdwg.mxu0
    %618 = vmatprep.subr.mxu0 0.0
    %v619 = vand.u32 %v86, 4294901760
    %620 = vmatpush1.msra.mxu0 %v619
    %621 = vmatprep.subr.mxu0 0.0
    %v622 = vand.u32 %v87, 4294901760
    %623 = vmatpush1.msra.mxu0 %v622
    %624 = vmatprep.subr.mxu0 0.0
    %625 = vmatpush1.msra.mxu0 0.0
    %626 = vmatprep.subr.mxu0 0.0
    %627 = vmatpush1.msra.mxu0 0.0
    %628 = vmatprep.subr.mxu0 0.0
    %629 = vmatpush1.msra.mxu0 0.0
    %630 = vmatprep.subr.mxu0 0.0
    %631 = vmatpush1.msra.mxu0 0.0
    %632 = vmatprep.subr.mxu0 0.0
    %633 = vmatpush1.msra.mxu0 0.0
    %634 = vmatprep.subr.mxu0 0.0
    %635 = vmatpush1.msra.mxu0 0.0
    %636 = vmatprep.subr.mxu0 0.0
    %637 = vmatpush1.msra.mxu0 0.0
    %638 = vmatprep.subr.mxu0 0.0
    %639 = vmatpush1.msra.mxu0 0.0
    %640 = vmatprep.subr.mxu0 0.0
    %641 = vmatpush1.msra.mxu0 0.0
    %642 = vmatprep.subr.mxu0 0.0
    %643 = vmatpush1.msra.mxu0 0.0
    %644 = vmatprep.subr.mxu0 0.0
    %645 = vmatpush1.msra.mxu0 0.0
    %646 = vmatprep.subr.mxu0 0.0
    %647 = vmatpush1.msra.mxu0 0.0
    %648 = vmatprep.subr.mxu0 0.0
    %649 = vmatpush1.msra.mxu0 0.0
    %650 = vmatprep.subr.mxu0 0.0
    %651 = vmatpush1.msra.mxu0 0.0
    %652 = vmatprep.subr.mxu0 0.0
    %653 = vmatpush1.msra.mxu0 0.0
    %654 = vmatprep.subr.mxu0 0.0
    %655 = vmatpush1.msra.mxu0 0.0
    %656 = vmatprep.subr.mxu0 0.0
    %657 = vmatpush1.msra.mxu0 0.0
    %658 = vmatprep.subr.mxu0 0.0
    %659 = vmatpush1.msra.mxu0 0.0
    %660 = vmatprep.subr.mxu0 0.0
    %661 = vmatpush1.msra.mxu0 0.0
    %662 = vmatprep.subr.mxu0 0.0
    %663 = vmatpush1.msra.mxu0 0.0
    %664 = vmatprep.subr.mxu0 0.0
    %665 = vmatpush1.msra.mxu0 0.0
    %666 = vmatprep.subr.mxu0 0.0
    %667 = vmatpush1.msra.mxu0 0.0
    %668 = vmatprep.subr.mxu0 0.0
    %669 = vmatpush1.msra.mxu0 0.0
    %670 = vmatprep.subr.mxu0 0.0
    %671 = vmatpush1.msra.mxu0 0.0
    %672 = vmatprep.subr.mxu0 0.0
    %673 = vmatpush1.msra.mxu0 0.0
    %674 = vmatprep.subr.mxu0 0.0
    %675 = vmatpush1.msra.mxu0 0.0
    %676 = vmatprep.subr.mxu0 0.0
    %677 = vmatpush1.msra.mxu0 0.0
    %678 = vmatprep.subr.mxu0 0.0
    %679 = vmatpush1.msra.mxu0 0.0
    %680 = vmatprep.subr.mxu0 0.0
    %681 = vmatpush1.msra.mxu0 0.0
    %682 = vmatprep.subr.mxu0 0.0
    %683 = vmatpush1.msra.mxu0 0.0
    %684 = vmatprep.mubr.f32.mxu0 0.0
    %v685 = vand.u32 %v110, 4294901760
    %686 = vmatmul.mubr.f32.gmra.mrb[0].mxu0 %v685
    %v687 = vpop.f32.mrb[0].mxu0
    %v688 = vadd.f32 %v597, %v687
    %v689 = vpop.f32.mrb[0].mxu0
    %690 = vmatprep.mubr.f32.mxu0 0.0
    %v691 = vand.u32 %v113, 4294901760
    %692 = vmatmul.mubr.f32.gmra.mrb[0].mxu0 %v691
    %v693 = vpop.f32.mrb[0].mxu0
    %v694 = vadd.f32 %v603, %v693
    %v695 = vpop.f32.mrb[0].mxu0
    %696 = vmatprep.mubr.f32.mxu0 0.0
    %v697 = vand.u32 %v116, 4294901760
    %698 = vmatmul.mubr.f32.gmra.mrb[0].mxu0 %v697
    %v699 = vpop.f32.mrb[0].mxu0
    %v700 = vadd.f32 %v609, %v699
    %v701 = vpop.f32.mrb[0].mxu0
    %702 = vmatprep.mubr.f32.mxu0 0.0
    %v703 = vand.u32 %v119, 4294901760
    %704 = vmatmul.mubr.f32.gmra.mrb[0].mxu0 %v703
    %v705 = vpop.f32.mrb[0].mxu0
    %v706 = vadd.f32 %v615, %v705
    %v707 = vpop.f32.mrb[0].mxu0
    %708 = vdwg.mxu0
    %v709 = vmax.f32 %v688, 0.0
    %v710 = vmax.f32 %v694, 0.0
    %v711 = vmax.f32 %v700, 0.0
    %v712 = vmax.f32 %v706, 0.0
    %714 = vset.pattern.permute.xlu0 0
    %715 = vperm.xlu0 %714, %v40
    %v716 = vpop.permute.xlu0 %715
    %vm718 = vcmask 261120
    %v720 = vsel %vm718, %v39, 0
    %722 = vmatprep.subr.mxu0 0.0
    %v723 = vand.u32 %v709, 4294901760
    %724 = vmatpush1.msra.mxu0 %v723
    %725 = vmatprep.subr.mxu0 0.0
    %v726 = vand.u32 %v710, 4294901760
    %727 = vmatpush1.msra.mxu0 %v726
    %728 = vmatprep.subr.mxu0 0.0
    %v729 = vand.u32 %v711, 4294901760
    %730 = vmatpush1.msra.mxu0 %v729
    %731 = vmatprep.subr.mxu0 0.0
    %v732 = vand.u32 %v712, 4294901760
    %733 = vmatpush1.msra.mxu0 %v732
    %734 = vmatprep.subr.mxu0 0.0
    %735 = vmatpush1.msra.mxu0 0.0
    %736 = vmatprep.subr.mxu0 0.0
    %737 = vmatpush1.msra.mxu0 0.0
    %738 = vmatprep.subr.mxu0 0.0
    %739 = vmatpush1.msra.mxu0 0.0
    %740 = vmatprep.subr.mxu0 0.0
    %741 = vmatpush1.msra.mxu0 0.0
    %742 = vmatprep.subr.mxu0 0.0
    %743 = vmatpush1.msra.mxu0 0.0
    %744 = vmatprep.subr.mxu0 0.0
    %745 = vmatpush1.msra.mxu0 0.0
    %746 = vmatprep.subr.mxu0 0.0
    %747 = vmatpush1.msra.mxu0 0.0
    %748 = vmatprep.subr.mxu0 0.0
    %749 = vmatpush1.msra.mxu0 0.0
    %750 = vmatprep.subr.mxu0 0.0
    %751 = vmatpush1.msra.mxu0 0.0
    %752 = vmatprep.subr.mxu0 0.0
    %753 = vmatpush1.msra.mxu0 0.0
    %754 = vmatprep.subr.mxu0 0.0
    %755 = vmatpush1.msra.mxu0 0.0
    %756 = vmatprep.subr.mxu0 0.0
    %757 = vmatpush1.msra.mxu0 0.0
    %758 = vmatprep.subr.mxu0 0.0
    %759 = vmatpush1.msra.mxu0 0.0
    %760 = vmatprep.subr.mxu0 0.0
    %761 = vmatpush1.msra.mxu0 0.0
    %762 = vmatprep.subr.mxu0 0.0
    %763 = vmatpush1.msra.mxu0 0.0
    %764 = vmatprep.subr.mxu0 0.0
    %765 = vmatpush1.msra.mxu0 0.0
    %766 = vmatprep.subr.mxu0 0.0
    %767 = vmatpush1.msra.mxu0 0.0
    %768 = vmatprep.subr.mxu0 0.0
    %769 = vmatpush1.msra.mxu0 0.0
    %770 = vmatprep.subr.mxu0 0.0
    %771 = vmatpush1.msra.mxu0 0.0
    %772 = vmatprep.subr.mxu0 0.0
    %773 = vmatpush1.msra.mxu0 0.0
    %774 = vmatprep.subr.mxu0 0.0
    %775 = vmatpush1.msra.mxu0 0.0
    %776 = vmatprep.subr.mxu0 0.0
    %777 = vmatpush1.msra.mxu0 0.0
    %778 = vmatprep.subr.mxu0 0.0
    %779 = vmatpush1.msra.mxu0 0.0
    %780 = vmatprep.subr.mxu0 0.0
    %781 = vmatpush1.msra.mxu0 0.0
    %782 = vmatprep.subr.mxu0 0.0
    %783 = vmatpush1.msra.mxu0 0.0
    %784 = vmatprep.subr.mxu0 0.0
    %785 = vmatpush1.msra.mxu0 0.0
    %786 = vmatprep.subr.mxu0 0.0
    %787 = vmatpush1.msra.mxu0 0.0
    %788 = vmatprep.subr.mxu0 0.0
    %789 = vmatpush1.msra.mxu0 0.0
    %790 = vmatprep.mubr.f32.mxu0 0.0
    %v791 = vand.u32 %v720, 4294901760
    %v792 = vsub.f32 %v720, %v791
    %v793 = vand.u32 %v792, 4294901760
    %v794 = vsub.f32 %v792, %v793
    %v795 = vand.u32 %v794, 4294901760
    %796 = vmatmul.mubr.f32.gmra.mrb[0].mxu0 %v795
    %v797 = vpop.f32.mrb[0].mxu0
    %v798 = vadd.f32 %v716, %v797
    %v799 = vpop.f32.mrb[0].mxu0
    %800 = vdwg.mxu0
    %801 = vmatprep.subr.mxu0 0.0
    %v802 = vand.u32 %v709, 4294901760
    %v803 = vsub.f32 %v709, %v802
    %v804 = vand.u32 %v803, 4294901760
    %v805 = vsub.f32 %v803, %v804
    %v806 = vand.u32 %v805, 4294901760
    %807 = vmatpush1.msra.mxu0 %v806
    %808 = vmatprep.subr.mxu0 0.0
    %v809 = vand.u32 %v710, 4294901760
    %v810 = vsub.f32 %v710, %v809
    %v811 = vand.u32 %v810, 4294901760
    %v812 = vsub.f32 %v810, %v811
    %v813 = vand.u32 %v812, 4294901760
    %814 = vmatpush1.msra.mxu0 %v813
    %815 = vmatprep.subr.mxu0 0.0
    %v816 = vand.u32 %v711, 4294901760
    %v817 = vsub.f32 %v711, %v816
    %v818 = vand.u32 %v817, 4294901760
    %v819 = vsub.f32 %v817, %v818
    %v820 = vand.u32 %v819, 4294901760
    %821 = vmatpush1.msra.mxu0 %v820
    %822 = vmatprep.subr.mxu0 0.0
    %v823 = vand.u32 %v712, 4294901760
    %v824 = vsub.f32 %v712, %v823
    %v825 = vand.u32 %v824, 4294901760
    %v826 = vsub.f32 %v824, %v825
    %v827 = vand.u32 %v826, 4294901760
    %828 = vmatpush1.msra.mxu0 %v827
    %829 = vmatprep.subr.mxu0 0.0
    %830 = vmatpush1.msra.mxu0 0.0
    %831 = vmatprep.subr.mxu0 0.0
    %832 = vmatpush1.msra.mxu0 0.0
    %833 = vmatprep.subr.mxu0 0.0
    %834 = vmatpush1.msra.mxu0 0.0
    %835 = vmatprep.subr.mxu0 0.0
    %836 = vmatpush1.msra.mxu0 0.0
    %837 = vmatprep.subr.mxu0 0.0
    %838 = vmatpush1.msra.mxu0 0.0
    %839 = vmatprep.subr.mxu0 0.0
    %840 = vmatpush1.msra.mxu0 0.0
    %841 = vmatprep.subr.mxu0 0.0
    %842 = vmatpush1.msra.mxu0 0.0
    %843 = vmatprep.subr.mxu0 0.0
    %844 = vmatpush1.msra.mxu0 0.0
    %845 = vmatprep.subr.mxu0 0.0
    %846 = vmatpush1.msra.mxu0 0.0
    %847 = vmatprep.subr.mxu0 0.0
    %848 = vmatpush1.msra.mxu0 0.0
    %849 = vmatprep.subr.mxu0 0.0
    %850 = vmatpush1.msra.mxu0 0.0
    %851 = vmatprep.subr.mxu0 0.0
    %852 = vmatpush1.msra.mxu0 0.0
    %853 = vmatprep.subr.mxu0 0.0
    %854 = vmatpush1.msra.mxu0 0.0
    %855 = vmatprep.subr.mxu0 0.0
    %856 = vmatpush1.msra.mxu0 0.0
    %857 = vmatprep.subr.mxu0 0.0
    %858 = vmatpush1.msra.mxu0 0.0
    %859 = vmatprep.subr.mxu0 0.0
    %860 = vmatpush1.msra.mxu0 0.0
    %861 = vmatprep.subr.mxu0 0.0
    %862 = vmatpush1.msra.mxu0 0.0
    %863 = vmatprep.subr.mxu0 0.0
    %864 = vmatpush1.msra.mxu0 0.0
    %865 = vmatprep.subr.mxu0 0.0
    %866 = vmatpush1.msra.mxu0 0.0
    %867 = vmatprep.subr.mxu0 0.0
    %868 = vmatpush1.msra.mxu0 0.0
    %869 = vmatprep.subr.mxu0 0.0
    %870 = vmatpush1.msra.mxu0 0.0
    %871 = vmatprep.subr.mxu0 0.0
    %872 = vmatpush1.msra.mxu0 0.0
    %873 = vmatprep.subr.mxu0 0.0
    %874 = vmatpush1.msra.mxu0 0.0
    %875 = vmatprep.subr.mxu0 0.0
    %876 = vmatpush1.msra.mxu0 0.0
    %877 = vmatprep.subr.mxu0 0.0
    %878 = vmatpush1.msra.mxu0 0.0
    %879 = vmatprep.subr.mxu0 0.0
    %880 = vmatpush1.msra.mxu0 0.0
    %881 = vmatprep.subr.mxu0 0.0
    %882 = vmatpush1.msra.mxu0 0.0
    %883 = vmatprep.subr.mxu0 0.0
    %884 = vmatpush1.msra.mxu0 0.0
    %885 = vmatprep.mubr.f32.mxu0 0.0
    %v886 = vand.u32 %v720, 4294901760
    %887 = vmatmul.mubr.f32.gmra.mrb[0].mxu0 %v886
    %v888 = vpop.f32.mrb[0].mxu0
    %v889 = vadd.f32 %v798, %v888
    %v890 = vpop.f32.mrb[0].mxu0
    %891 = vdwg.mxu0
    %892 = vmatprep.subr.mxu0 0.0
    %v893 = vand.u32 %v709, 4294901760
    %v894 = vsub.f32 %v709, %v893
    %895 = vmatpush1.msra.mxu0 %v894
    %896 = vmatprep.subr.mxu0 0.0
    %v897 = vand.u32 %v710, 4294901760
    %v898 = vsub.f32 %v710, %v897
    %899 = vmatpush1.msra.mxu0 %v898
    %900 = vmatprep.subr.mxu0 0.0
    %v901 = vand.u32 %v711, 4294901760
    %v902 = vsub.f32 %v711, %v901
    %903 = vmatpush1.msra.mxu0 %v902
    %904 = vmatprep.subr.mxu0 0.0
    %v905 = vand.u32 %v712, 4294901760
    %v906 = vsub.f32 %v712, %v905
    %907 = vmatpush1.msra.mxu0 %v906
    %908 = vmatprep.subr.mxu0 0.0
    %909 = vmatpush1.msra.mxu0 0.0
    %910 = vmatprep.subr.mxu0 0.0
    %911 = vmatpush1.msra.mxu0 0.0
    %912 = vmatprep.subr.mxu0 0.0
    %913 = vmatpush1.msra.mxu0 0.0
    %914 = vmatprep.subr.mxu0 0.0
    %915 = vmatpush1.msra.mxu0 0.0
    %916 = vmatprep.subr.mxu0 0.0
    %917 = vmatpush1.msra.mxu0 0.0
    %918 = vmatprep.subr.mxu0 0.0
    %919 = vmatpush1.msra.mxu0 0.0
    %920 = vmatprep.subr.mxu0 0.0
    %921 = vmatpush1.msra.mxu0 0.0
    %922 = vmatprep.subr.mxu0 0.0
    %923 = vmatpush1.msra.mxu0 0.0
    %924 = vmatprep.subr.mxu0 0.0
    %925 = vmatpush1.msra.mxu0 0.0
    %926 = vmatprep.subr.mxu0 0.0
    %927 = vmatpush1.msra.mxu0 0.0
    %928 = vmatprep.subr.mxu0 0.0
    %929 = vmatpush1.msra.mxu0 0.0
    %930 = vmatprep.subr.mxu0 0.0
    %931 = vmatpush1.msra.mxu0 0.0
    %932 = vmatprep.subr.mxu0 0.0
    %933 = vmatpush1.msra.mxu0 0.0
    %934 = vmatprep.subr.mxu0 0.0
    %935 = vmatpush1.msra.mxu0 0.0
    %936 = vmatprep.subr.mxu0 0.0
    %937 = vmatpush1.msra.mxu0 0.0
    %938 = vmatprep.subr.mxu0 0.0
    %939 = vmatpush1.msra.mxu0 0.0
    %940 = vmatprep.subr.mxu0 0.0
    %941 = vmatpush1.msra.mxu0 0.0
    %942 = vmatprep.subr.mxu0 0.0
    %943 = vmatpush1.msra.mxu0 0.0
    %944 = vmatprep.subr.mxu0 0.0
    %945 = vmatpush1.msra.mxu0 0.0
    %946 = vmatprep.subr.mxu0 0.0
    %947 = vmatpush1.msra.mxu0 0.0
    %948 = vmatprep.subr.mxu0 0.0
    %949 = vmatpush1.msra.mxu0 0.0
    %950 = vmatprep.subr.mxu0 0.0
    %951 = vmatpush1.msra.mxu0 0.0
    %952 = vmatprep.subr.mxu0 0.0
    %953 = vmatpush1.msra.mxu0 0.0
    %954 = vmatprep.subr.mxu0 0.0
    %955 = vmatpush1.msra.mxu0 0.0
    %956 = vmatprep.subr.mxu0 0.0
    %957 = vmatpush1.msra.mxu0 0.0
    %958 = vmatprep.subr.mxu0 0.0
    %959 = vmatpush1.msra.mxu0 0.0
    %960 = vmatprep.subr.mxu0 0.0
    %961 = vmatpush1.msra.mxu0 0.0
    %962 = vmatprep.subr.mxu0 0.0
    %963 = vmatpush1.msra.mxu0 0.0
    %964 = vmatprep.mubr.f32.mxu0 0.0
    %v965 = vand.u32 %v720, 4294901760
    %v966 = vsub.f32 %v720, %v965
    %967 = vmatmul.mubr.f32.gmra.mrb[0].mxu0 %v966
    %v968 = vpop.f32.mrb[0].mxu0
    %v969 = vadd.f32 %v889, %v968
    %v970 = vpop.f32.mrb[0].mxu0
    %971 = vdwg.mxu0
    %972 = vmatprep.subr.mxu0 0.0
    %v973 = vand.u32 %v709, 4294901760
    %974 = vmatpush1.msra.mxu0 %v973
    %975 = vmatprep.subr.mxu0 0.0
    %v976 = vand.u32 %v710, 4294901760
    %977 = vmatpush1.msra.mxu0 %v976
    %978 = vmatprep.subr.mxu0 0.0
    %v979 = vand.u32 %v711, 4294901760
    %980 = vmatpush1.msra.mxu0 %v979
    %981 = vmatprep.subr.mxu0 0.0
    %v982 = vand.u32 %v712, 4294901760
    %983 = vmatpush1.msra.mxu0 %v982
    %984 = vmatprep.subr.mxu0 0.0
    %985 = vmatpush1.msra.mxu0 0.0
    %986 = vmatprep.subr.mxu0 0.0
    %987 = vmatpush1.msra.mxu0 0.0
    %988 = vmatprep.subr.mxu0 0.0
    %989 = vmatpush1.msra.mxu0 0.0
    %990 = vmatprep.subr.mxu0 0.0
    %991 = vmatpush1.msra.mxu0 0.0
    %992 = vmatprep.subr.mxu0 0.0
    %993 = vmatpush1.msra.mxu0 0.0
    %994 = vmatprep.subr.mxu0 0.0
    %995 = vmatpush1.msra.mxu0 0.0
    %996 = vmatprep.subr.mxu0 0.0
    %997 = vmatpush1.msra.mxu0 0.0
    %998 = vmatprep.subr.mxu0 0.0
    %999 = vmatpush1.msra.mxu0 0.0
    %1000 = vmatprep.subr.mxu0 0.0
    %1001 = vmatpush1.msra.mxu0 0.0
    %1002 = vmatprep.subr.mxu0 0.0
    %1003 = vmatpush1.msra.mxu0 0.0
    %1004 = vmatprep.subr.mxu0 0.0
    %1005 = vmatpush1.msra.mxu0 0.0
    %1006 = vmatprep.subr.mxu0 0.0
    %1007 = vmatpush1.msra.mxu0 0.0
    %1008 = vmatprep.subr.mxu0 0.0
    %1009 = vmatpush1.msra.mxu0 0.0
    %1010 = vmatprep.subr.mxu0 0.0
    %1011 = vmatpush1.msra.mxu0 0.0
    %1012 = vmatprep.subr.mxu0 0.0
    %1013 = vmatpush1.msra.mxu0 0.0
    %1014 = vmatprep.subr.mxu0 0.0
    %1015 = vmatpush1.msra.mxu0 0.0
    %1016 = vmatprep.subr.mxu0 0.0
    %1017 = vmatpush1.msra.mxu0 0.0
    %1018 = vmatprep.subr.mxu0 0.0
    %1019 = vmatpush1.msra.mxu0 0.0
    %1020 = vmatprep.subr.mxu0 0.0
    %1021 = vmatpush1.msra.mxu0 0.0
    %1022 = vmatprep.subr.mxu0 0.0
    %1023 = vmatpush1.msra.mxu0 0.0
    %1024 = vmatprep.subr.mxu0 0.0
    %1025 = vmatpush1.msra.mxu0 0.0
    %1026 = vmatprep.subr.mxu0 0.0
    %1027 = vmatpush1.msra.mxu0 0.0
    %1028 = vmatprep.subr.mxu0 0.0
    %1029 = vmatpush1.msra.mxu0 0.0
    %1030 = vmatprep.subr.mxu0 0.0
    %1031 = vmatpush1.msra.mxu0 0.0
    %1032 = vmatprep.subr.mxu0 0.0
    %1033 = vmatpush1.msra.mxu0 0.0
    %1034 = vmatprep.subr.mxu0 0.0
    %1035 = vmatpush1.msra.mxu0 0.0
    %1036 = vmatprep.subr.mxu0 0.0
    %1037 = vmatpush1.msra.mxu0 0.0
    %1038 = vmatprep.subr.mxu0 0.0
    %1039 = vmatpush1.msra.mxu0 0.0
    %1040 = vmatprep.mubr.f32.mxu0 0.0
    %v1041 = vand.u32 %v720, 4294901760
    %v1042 = vsub.f32 %v720, %v1041
    %v1043 = vand.u32 %v1042, 4294901760
    %1044 = vmatmul.mubr.f32.gmra.mrb[0].mxu0 %v1043
    %v1045 = vpop.f32.mrb[0].mxu0
    %v1046 = vadd.f32 %v969, %v1045
    %v1047 = vpop.f32.mrb[0].mxu0
    %1048 = vdwg.mxu0
    %1049 = vmatprep.subr.mxu0 0.0
    %v1050 = vand.u32 %v709, 4294901760
    %v1051 = vsub.f32 %v709, %v1050
    %v1052 = vand.u32 %v1051, 4294901760
    %1053 = vmatpush1.msra.mxu0 %v1052
    %1054 = vmatprep.subr.mxu0 0.0
    %v1055 = vand.u32 %v710, 4294901760
    %v1056 = vsub.f32 %v710, %v1055
    %v1057 = vand.u32 %v1056, 4294901760
    %1058 = vmatpush1.msra.mxu0 %v1057
    %1059 = vmatprep.subr.mxu0 0.0
    %v1060 = vand.u32 %v711, 4294901760
    %v1061 = vsub.f32 %v711, %v1060
    %v1062 = vand.u32 %v1061, 4294901760
    %1063 = vmatpush1.msra.mxu0 %v1062
    %1064 = vmatprep.subr.mxu0 0.0
    %v1065 = vand.u32 %v712, 4294901760
    %v1066 = vsub.f32 %v712, %v1065
    %v1067 = vand.u32 %v1066, 4294901760
    %1068 = vmatpush1.msra.mxu0 %v1067
    %1069 = vmatprep.subr.mxu0 0.0
    %1070 = vmatpush1.msra.mxu0 0.0
    %1071 = vmatprep.subr.mxu0 0.0
    %1072 = vmatpush1.msra.mxu0 0.0
    %1073 = vmatprep.subr.mxu0 0.0
    %1074 = vmatpush1.msra.mxu0 0.0
    %1075 = vmatprep.subr.mxu0 0.0
    %1076 = vmatpush1.msra.mxu0 0.0
    %1077 = vmatprep.subr.mxu0 0.0
    %1078 = vmatpush1.msra.mxu0 0.0
    %1079 = vmatprep.subr.mxu0 0.0
    %1080 = vmatpush1.msra.mxu0 0.0
    %1081 = vmatprep.subr.mxu0 0.0
    %1082 = vmatpush1.msra.mxu0 0.0
    %1083 = vmatprep.subr.mxu0 0.0
    %1084 = vmatpush1.msra.mxu0 0.0
    %1085 = vmatprep.subr.mxu0 0.0
    %1086 = vmatpush1.msra.mxu0 0.0
    %1087 = vmatprep.subr.mxu0 0.0
    %1088 = vmatpush1.msra.mxu0 0.0
    %1089 = vmatprep.subr.mxu0 0.0
    %1090 = vmatpush1.msra.mxu0 0.0
    %1091 = vmatprep.subr.mxu0 0.0
    %1092 = vmatpush1.msra.mxu0 0.0
    %1093 = vmatprep.subr.mxu0 0.0
    %1094 = vmatpush1.msra.mxu0 0.0
    %1095 = vmatprep.subr.mxu0 0.0
    %1096 = vmatpush1.msra.mxu0 0.0
    %1097 = vmatprep.subr.mxu0 0.0
    %1098 = vmatpush1.msra.mxu0 0.0
    %1099 = vmatprep.subr.mxu0 0.0
    %1100 = vmatpush1.msra.mxu0 0.0
    %1101 = vmatprep.subr.mxu0 0.0
    %1102 = vmatpush1.msra.mxu0 0.0
    %1103 = vmatprep.subr.mxu0 0.0
    %1104 = vmatpush1.msra.mxu0 0.0
    %1105 = vmatprep.subr.mxu0 0.0
    %1106 = vmatpush1.msra.mxu0 0.0
    %1107 = vmatprep.subr.mxu0 0.0
    %1108 = vmatpush1.msra.mxu0 0.0
    %1109 = vmatprep.subr.mxu0 0.0
    %1110 = vmatpush1.msra.mxu0 0.0
    %1111 = vmatprep.subr.mxu0 0.0
    %1112 = vmatpush1.msra.mxu0 0.0
    %1113 = vmatprep.subr.mxu0 0.0
    %1114 = vmatpush1.msra.mxu0 0.0
    %1115 = vmatprep.subr.mxu0 0.0
    %1116 = vmatpush1.msra.mxu0 0.0
    %1117 = vmatprep.subr.mxu0 0.0
    %1118 = vmatpush1.msra.mxu0 0.0
    %1119 = vmatprep.subr.mxu0 0.0
    %1120 = vmatpush1.msra.mxu0 0.0
    %1121 = vmatprep.subr.mxu0 0.0
    %1122 = vmatpush1.msra.mxu0 0.0
    %1123 = vmatprep.subr.mxu0 0.0
    %1124 = vmatpush1.msra.mxu0 0.0
    %1125 = vmatprep.mubr.f32.mxu0 0.0
    %v1126 = vand.u32 %v720, 4294901760
    %1127 = vmatmul.mubr.f32.gmra.mrb[0].mxu0 %v1126
    %v1128 = vpop.f32.mrb[0].mxu0
    %v1129 = vadd.f32 %v1046, %v1128
    %v1130 = vpop.f32.mrb[0].mxu0
    %1131 = vdwg.mxu0
    %1132 = vmatprep.subr.mxu0 0.0
    %v1133 = vand.u32 %v709, 4294901760
    %1134 = vmatpush1.msra.mxu0 %v1133
    %1135 = vmatprep.subr.mxu0 0.0
    %v1136 = vand.u32 %v710, 4294901760
    %1137 = vmatpush1.msra.mxu0 %v1136
    %1138 = vmatprep.subr.mxu0 0.0
    %v1139 = vand.u32 %v711, 4294901760
    %1140 = vmatpush1.msra.mxu0 %v1139
    %1141 = vmatprep.subr.mxu0 0.0
    %v1142 = vand.u32 %v712, 4294901760
    %1143 = vmatpush1.msra.mxu0 %v1142
    %1144 = vmatprep.subr.mxu0 0.0
    %1145 = vmatpush1.msra.mxu0 0.0
    %1146 = vmatprep.subr.mxu0 0.0
    %1147 = vmatpush1.msra.mxu0 0.0
    %1148 = vmatprep.subr.mxu0 0.0
    %1149 = vmatpush1.msra.mxu0 0.0
    %1150 = vmatprep.subr.mxu0 0.0
    %1151 = vmatpush1.msra.mxu0 0.0
    %1152 = vmatprep.subr.mxu0 0.0
    %1153 = vmatpush1.msra.mxu0 0.0
    %1154 = vmatprep.subr.mxu0 0.0
    %1155 = vmatpush1.msra.mxu0 0.0
    %1156 = vmatprep.subr.mxu0 0.0
    %1157 = vmatpush1.msra.mxu0 0.0
    %1158 = vmatprep.subr.mxu0 0.0
    %1159 = vmatpush1.msra.mxu0 0.0
    %1160 = vmatprep.subr.mxu0 0.0
    %1161 = vmatpush1.msra.mxu0 0.0
    %1162 = vmatprep.subr.mxu0 0.0
    %1163 = vmatpush1.msra.mxu0 0.0
    %1164 = vmatprep.subr.mxu0 0.0
    %1165 = vmatpush1.msra.mxu0 0.0
    %1166 = vmatprep.subr.mxu0 0.0
    %1167 = vmatpush1.msra.mxu0 0.0
    %1168 = vmatprep.subr.mxu0 0.0
    %1169 = vmatpush1.msra.mxu0 0.0
    %1170 = vmatprep.subr.mxu0 0.0
    %1171 = vmatpush1.msra.mxu0 0.0
    %1172 = vmatprep.subr.mxu0 0.0
    %1173 = vmatpush1.msra.mxu0 0.0
    %1174 = vmatprep.subr.mxu0 0.0
    %1175 = vmatpush1.msra.mxu0 0.0
    %1176 = vmatprep.subr.mxu0 0.0
    %1177 = vmatpush1.msra.mxu0 0.0
    %1178 = vmatprep.subr.mxu0 0.0
    %1179 = vmatpush1.msra.mxu0 0.0
    %1180 = vmatprep.subr.mxu0 0.0
    %1181 = vmatpush1.msra.mxu0 0.0
    %1182 = vmatprep.subr.mxu0 0.0
    %1183 = vmatpush1.msra.mxu0 0.0
    %1184 = vmatprep.subr.mxu0 0.0
    %1185 = vmatpush1.msra.mxu0 0.0
    %1186 = vmatprep.subr.mxu0 0.0
    %1187 = vmatpush1.msra.mxu0 0.0
    %1188 = vmatprep.subr.mxu0 0.0
    %1189 = vmatpush1.msra.mxu0 0.0
    %1190 = vmatprep.subr.mxu0 0.0
    %1191 = vmatpush1.msra.mxu0 0.0
    %1192 = vmatprep.subr.mxu0 0.0
    %1193 = vmatpush1.msra.mxu0 0.0
    %1194 = vmatprep.subr.mxu0 0.0
    %1195 = vmatpush1.msra.mxu0 0.0
    %1196 = vmatprep.subr.mxu0 0.0
    %1197 = vmatpush1.msra.mxu0 0.0
    %1198 = vmatprep.subr.mxu0 0.0
    %1199 = vmatpush1.msra.mxu0 0.0
    %1200 = vmatprep.mubr.f32.mxu0 0.0
    %v1201 = vand.u32 %v720, 4294901760
    %1202 = vmatmul.mubr.f32.gmra.mrb[0].mxu0 %v1201
    %v1203 = vpop.f32.mrb[0].mxu0
    %v1204 = vadd.f32 %v1129, %v1203
    %v1205 = vpop.f32.mrb[0].mxu0
    %1206 = vdwg.mxu0
    %1207 = vst [vmem:[#allocation2] sm:$0x3] %v1204
    // Predicated region
    $region30: #{tpu_custom_call.1} parent=1 // pred_check
      _
    $region31: #{tpu_custom_call.1} parent=1 // pred_check_branch
      %1209 = sbr.rel (0) target = $region33
    $region32: #{tpu_custom_call.1} parent=1 // pred_region
      %s1211 = ssub.s32 32, 32
      %1212 = vsyncadd [#allocation3], %s1211
      %s1214 = sshll.u32 [#allocation2], 4
      %s1215 = int_to_ptr.vmem [resolvable:$true] %s1214
      %1217 = dma.vmem_to_hbm [thread:$0]  %s1215, 32, %s7, [#allocation3]
    $region33: #{tpu_custom_call.1} parent=1 // pred_fallthru
      _
    // Predicated region
    $region34: #{tpu_custom_call.1} parent=1 // pred_check
      _
    $region35: #{tpu_custom_call.1} parent=1 // pred_check_branch
      %1219 = sbr.rel (0) target = $region37
    $region36: #{tpu_custom_call.1} parent=1 // pred_region
      %1220 = dma.done [#allocation3], 32
    $region37: #{tpu_custom_call.1} parent=1 // pred_fallthru
      _
    %1221 = vsyncpa [#allocation3], 1

</llo_original>
